<compile_context>
chip_gen: v7x
topology: tpu7x:2x2x1
jax: 0.10.0
libtpu: 0.0.40
codegen_flags: <defaults>
</compile_context>

<pallas_src>
import jax
import jax.numpy as jnp
from jax import lax
from jax.experimental import pallas as pl
from jax.experimental.pallas import tpu as pltpu


def _round_up(a: int, b: int) -> int:
    return (a + b - 1) // b * b


def _pick_tile_n(n: int, h_pad: int,
                 target_tile_bytes: int = 2 * 1024 * 1024,
                 max_tile: int = 4096) -> int:
    rows = (target_tile_bytes // (4 * h_pad)) // 128 * 128
    rows = max(128, min(rows, max_tile))
    return min(rows, _round_up(n, 128))


def _stats_kernel(batch_ref, x_ref, w_ref, b_ref, ms_ref, ab_ref,
                  sum_ref, sumsq_ref, cnt_ref):
    """Accumulate per-graph sum / sum(x^2) / count; finalize A/B tables on last tile."""

    @pl.when(pl.program_id(0) == 0)
    def _init():
        sum_ref[...] = jnp.zeros_like(sum_ref)
        sumsq_ref[...] = jnp.zeros_like(sumsq_ref)
        cnt_ref[...] = jnp.zeros_like(cnt_ref)

    x = x_ref[...]                                            # [T, H] f32
    g_pad = sum_ref.shape[0]
    t = x.shape[0]
    # in-register one-hot mask over graphs: mask[g, t] = (batch[t] == g)
    gids = lax.broadcasted_iota(jnp.int32, (g_pad, t), 0)
    mask = (gids == batch_ref[...]).astype(jnp.float32)       # [G_pad, T]

    # per-graph partial sums on the MXU, contracting over the (large) node-tile dim
    sum_ref[...] += lax.dot_general(mask, x, (((1,), (0,)), ((), ())),
                                    preferred_element_type=jnp.float32)
    sumsq_ref[...] += lax.dot_general(mask, x * x, (((1,), (0,)), ((), ())),
                                      preferred_element_type=jnp.float32)
    cnt_ref[...] += jnp.sum(mask, axis=1, keepdims=True)      # [G_pad, 1]

    @pl.when(pl.program_id(0) == pl.num_programs(0) - 1)
    def _finalize():
        h = sum_ref.shape[1]
        cnt = jnp.maximum(cnt_ref[...], 1.0)                  # clamp(count, 1)
        mean = sum_ref[...] / cnt                             # [G_pad, H]
        # sum((x - mean)^2) = sum(x^2) - count * mean^2  (single-pass form)
        var_sum = jnp.maximum(sumsq_ref[...] - cnt * mean * mean, 0.0)
        denom = jnp.maximum(cnt - 1.0, 1.0) + 1e-6            # unbiased + torch_scatter eps
        std = jnp.sqrt(var_sum / denom)
        inv = 1.0 / (std + 1e-8)                              # exact recip, only [G,H] work
        a_tbl = w_ref[...] * inv                              # [1,H] * [G_pad,H]
        b_tbl = b_ref[...] - mean * ms_ref[...] * a_tbl
        ab_ref[:, :h] = a_tbl
        ab_ref[:, h:] = b_tbl


def _normalize_kernel(batch_ref, x_ref, ab_ref, o_ref):
    """out = x * A[batch] + B[batch] per node tile."""
    g_pad = ab_ref.shape[0]
    t, h = x_ref.shape
    gids = lax.broadcasted_iota(jnp.int32, (g_pad, t), 0)
    mask = (gids == batch_ref[...]).astype(jnp.float32)       # [G_pad, T]
    # broadcast the resident per-graph affine table to this tile's rows (one small matmul)
    ab_rows = lax.dot_general(mask, ab_ref[...], (((0,), (0,)), ((), ())),
                              preferred_element_type=jnp.float32)   # [T, 2H]
    o_ref[...] = (x_ref[...] * ab_rows[:, :h] + ab_rows[:, h:]).astype(o_ref.dtype)


def graph_norm(x, batch, weight, bias, mean_scale, num_graphs):
    """x: [N, H] float, batch: [N] int32 in [0, num_graphs)."""
    n, h = x.shape
    h_pad = _round_up(h, 128)
    g_pad = _round_up(num_graphs + 1, 8)      # +1: dummy graph id for padded rows
    tile_n = _pick_tile_n(n, h_pad)
    n_pad = _round_up(n, tile_n)
    num_tiles = n_pad // tile_n

    x_p = jnp.pad(x.astype(jnp.float32), ((0, n_pad - n), (0, h_pad - h)))
    batch_p = jnp.pad(batch.astype(jnp.int32), (0, n_pad - n),
                      constant_values=num_graphs).reshape(1, n_pad)
    w_p = jnp.pad(weight.astype(jnp.float32), (0, h_pad - h)).reshape(1, h_pad)
    b_p = jnp.pad(bias.astype(jnp.float32), (0, h_pad - h)).reshape(1, h_pad)
    ms_p = jnp.pad(mean_scale.astype(jnp.float32), (0, h_pad - h)).reshape(1, h_pad)

    # Pass 1: per-graph statistics -> fused affine table AB = [A | B], [G_pad, 2*H_pad]
    ab = pl.pallas_call(
        _stats_kernel,
        out_shape=jax.ShapeDtypeStruct((g_pad, 2 * h_pad), jnp.float32),
        grid=(num_tiles,),
        in_specs=[
            pl.BlockSpec((1, tile_n), lambda i: (0, i)),        # batch ids
            pl.BlockSpec((tile_n, h_pad), lambda i: (i, 0)),    # x tile
            pl.BlockSpec((1, h_pad), lambda i: (0, 0)),         # weight
            pl.BlockSpec((1, h_pad), lambda i: (0, 0)),         # bias
            pl.BlockSpec((1, h_pad), lambda i: (0, 0)),         # mean_scale
        ],
        out_specs=pl.BlockSpec((g_pad, 2 * h_pad), lambda i: (0, 0)),
        scratch_shapes=[
            pltpu.VMEM((g_pad, h_pad), jnp.float32),   # sum(x)
            pltpu.VMEM((g_pad, h_pad), jnp.float32),   # sum(x^2)
            pltpu.VMEM((g_pad, 1), jnp.float32),       # counts
        ],
        compiler_params=pltpu.CompilerParams(
            dimension_semantics=("arbitrary",)),
    )(batch_p, x_p, w_p, b_p, ms_p)

    # Pass 2: normalize node tiles; "parallel" lets v7x split tiles across its 2 TCs.
    out = pl.pallas_call(
        _normalize_kernel,
        out_shape=jax.ShapeDtypeStruct((n_pad, h_pad), x.dtype),
        grid=(num_tiles,),
        in_specs=[
            pl.BlockSpec((1, tile_n), lambda i: (0, i)),
            pl.BlockSpec((tile_n, h_pad), lambda i: (i, 0)),
            pl.BlockSpec((g_pad, 2 * h_pad), lambda i: (0, 0)),
        ],
        out_specs=pl.BlockSpec((tile_n, h_pad), lambda i: (i, 0)),
        compiler_params=pltpu.CompilerParams(
            dimension_semantics=("parallel",)),
    )(batch_p, x_p, ab)

    return out[:n, :h]


if __name__ == "__main__":
    N, H, G = 16, 32, 4   # nodes, hidden_dimension, graphs in the batch

    key = jax.random.PRNGKey(0)
    x = jax.random.normal(key, (N, H), dtype=jnp.float32)
    batch = jnp.array([0, 0, 0, 0, 1, 1, 1, 2, 2, 2, 2, 2, 3, 3, 3, 3],
                      dtype=jnp.int32)

    # reset_parameters(): weight=1, mean_scale=1, bias=0
    weight = jnp.ones((H,), dtype=jnp.float32)
    bias = jnp.zeros((H,), dtype=jnp.float32)
    mean_scale = jnp.ones((H,), dtype=jnp.float32)

    out = graph_norm(x, batch, weight, bias, mean_scale, num_graphs=G)
    out = jax.block_until_ready(out)

    # pure-JAX reference with the module / torch_scatter semantics (two-pass diff^2 form)
    cnt = jax.ops.segment_sum(jnp.ones((N,), jnp.float32), batch, num_segments=G)
    cnt_c = jnp.maximum(cnt, 1.0)[:, None]
    mean = jax.ops.segment_sum(x, batch, num_segments=G) / cnt_c
    diff = x - mean[batch]
    var_sum = jax.ops.segment_sum(diff * diff, batch, num_segments=G)
    std = jnp.sqrt(var_sum / (jnp.maximum(cnt_c - 1.0, 1.0) + 1e-6))
    ref = weight * (x - mean[batch] * mean_scale) / (std[batch] + 1e-8) + bias

    assert jnp.allclose(out, ref, atol=1e-5, rtol=1e-5), float(
        jnp.max(jnp.abs(out - ref)))
    print("KERNEL_OK")
</pallas_src>

<mosaic_0001>
module attributes {stable_mosaic.version = 11 : i64} {
  func.func @_stats_kernel(%arg0: i32, %arg1: memref<1x128xi32, #tpu.memory_space<vmem>>, %arg2: memref<128x128xf32, #tpu.memory_space<vmem>>, %arg3: memref<1x128xf32, #tpu.memory_space<vmem>>, %arg4: memref<1x128xf32, #tpu.memory_space<vmem>>, %arg5: memref<1x128xf32, #tpu.memory_space<vmem>>, %arg6: memref<8x256xf32, #tpu.memory_space<vmem>>, %arg7: memref<8x128xf32, #tpu.memory_space<vmem>>, %arg8: memref<8x128xf32, #tpu.memory_space<vmem>>, %arg9: memref<8x1xf32, #tpu.memory_space<vmem>>) attributes {dimension_semantics = [#tpu.dimension_semantics<arbitrary>], iteration_bounds = array<i64: 1>, scalar_prefetch = 0 : i64, scratch_operands = 3 : i64, tpu.core_type = #tpu.core_type<tc>, window_params = [{transform_indices = @transform_0, window_bounds = array<i64: 1, 128>}, {transform_indices = @transform_1, window_bounds = array<i64: 128, 128>}, {pipeline_mode = #tpu.pipeline_mode<synchronous>, transform_indices = @transform_2, window_bounds = array<i64: 1, 128>}, {pipeline_mode = #tpu.pipeline_mode<synchronous>, transform_indices = @transform_3, window_bounds = array<i64: 1, 128>}, {pipeline_mode = #tpu.pipeline_mode<synchronous>, transform_indices = @transform_4, window_bounds = array<i64: 1, 128>}, {pipeline_mode = #tpu.pipeline_mode<synchronous>, transform_indices = @transform_5, window_bounds = array<i64: 8, 256>}]} {
    %c0_i32 = arith.constant 0 : i32
    %0 = arith.cmpi eq, %arg0, %c0_i32 : i32
    %1 = arith.extui %0 : i1 to i32
    %c0_i32_0 = arith.constant 0 : i32
    %2 = arith.cmpi ne, %1, %c0_i32_0 : i32
    scf.if %2 {
      %cst_20 = arith.constant 0.000000e+00 : f32
      %27 = vector.broadcast %cst_20 : f32 to vector<8x128xf32>
      %c0_21 = arith.constant 0 : index
      %c0_22 = arith.constant 0 : index
      %28 = vector.load %arg7[%c0_21, %c0_22] : memref<8x128xf32, #tpu.memory_space<vmem>>, vector<8x128xf32>
      tpu.vector_store %arg7[%c0_21, %c0_22], %27 {strides = array<i32>} : memref<8x128xf32, #tpu.memory_space<vmem>>, vector<8x128xf32>,
      %cst_23 = arith.constant 0.000000e+00 : f32
      %29 = vector.broadcast %cst_23 : f32 to vector<8x128xf32>
      %c0_24 = arith.constant 0 : index
      %c0_25 = arith.constant 0 : index
      %30 = vector.load %arg8[%c0_24, %c0_25] : memref<8x128xf32, #tpu.memory_space<vmem>>, vector<8x128xf32>
      tpu.vector_store %arg8[%c0_24, %c0_25], %29 {strides = array<i32>} : memref<8x128xf32, #tpu.memory_space<vmem>>, vector<8x128xf32>,
      %cst_26 = arith.constant 0.000000e+00 : f32
      %31 = vector.broadcast %cst_26 : f32 to vector<8x1xf32>
      %c0_27 = arith.constant 0 : index
      %c0_28 = arith.constant 0 : index
      %32 = vector.load %arg9[%c0_27, %c0_28] : memref<8x1xf32, #tpu.memory_space<vmem>>, vector<8x1xf32>
      tpu.vector_store %arg9[%c0_27, %c0_28], %31 {strides = array<i32>} : memref<8x1xf32, #tpu.memory_space<vmem>>, vector<8x1xf32>,
    } else {
    }
    %c0 = arith.constant 0 : index
    %c0_1 = arith.constant 0 : index
    %3 = vector.load %arg2[%c0, %c0_1] : memref<128x128xf32, #tpu.memory_space<vmem>>, vector<128x128xf32>
    %4 = tpu.iota {dimensions = array<i32: 0>} : vector<8x128xi32>
    %c0_2 = arith.constant 0 : index
    %c0_3 = arith.constant 0 : index
    %5 = vector.load %arg1[%c0_2, %c0_3] : memref<1x128xi32, #tpu.memory_space<vmem>>, vector<1x128xi32>
    %6 = vector.broadcast %5 : vector<1x128xi32> to vector<8x128xi32>
    %7 = arith.cmpi eq, %4, %6 : vector<8x128xi32>
    %8 = arith.extui %7 : vector<8x128xi1> to vector<8x128xi32>
    %9 = arith.sitofp %8 : vector<8x128xi32> to vector<8x128xf32>
    %c0_4 = arith.constant 0 : index
    %c0_5 = arith.constant 0 : index
    %10 = vector.load %arg7[%c0_4, %c0_5] : memref<8x128xf32, #tpu.memory_space<vmem>>, vector<8x128xf32>
    %cst = arith.constant dense<0.000000e+00> : vector<8x128xf32>
    %11 = tpu.matmul %9, %3, %cst {dimension_numbers = #tpu.dot_dimension_numbers<[1], [0], [0], [1], [0, 0, 1, 1], [], []>} : vector<8x128xf32>, vector<128x128xf32>, vector<8x128xf32> -> vector<8x128xf32>
    %12 = arith.addf %10, %11 : vector<8x128xf32>
    %c0_6 = arith.constant 0 : index
    %c0_7 = arith.constant 0 : index
    %13 = vector.load %arg7[%c0_6, %c0_7] : memref<8x128xf32, #tpu.memory_space<vmem>>, vector<8x128xf32>
    tpu.vector_store %arg7[%c0_6, %c0_7], %12 {strides = array<i32>} : memref<8x128xf32, #tpu.memory_space<vmem>>, vector<8x128xf32>,
    %c0_8 = arith.constant 0 : index
    %c0_9 = arith.constant 0 : index
    %14 = vector.load %arg8[%c0_8, %c0_9] : memref<8x128xf32, #tpu.memory_space<vmem>>, vector<8x128xf32>
    %15 = arith.mulf %3, %3 : vector<128x128xf32>
    %cst_10 = arith.constant dense<0.000000e+00> : vector<8x128xf32>
    %16 = tpu.matmul %9, %15, %cst_10 {dimension_numbers = #tpu.dot_dimension_numbers<[1], [0], [0], [1], [0, 0, 1, 1], [], []>} : vector<8x128xf32>, vector<128x128xf32>, vector<8x128xf32> -> vector<8x128xf32>
    %17 = arith.addf %14, %16 : vector<8x128xf32>
    %c0_11 = arith.constant 0 : index
    %c0_12 = arith.constant 0 : index
    %18 = vector.load %arg8[%c0_11, %c0_12] : memref<8x128xf32, #tpu.memory_space<vmem>>, vector<8x128xf32>
    tpu.vector_store %arg8[%c0_11, %c0_12], %17 {strides = array<i32>} : memref<8x128xf32, #tpu.memory_space<vmem>>, vector<8x128xf32>,
    %c0_13 = arith.constant 0 : index
    %c0_14 = arith.constant 0 : index
    %19 = vector.load %arg9[%c0_13, %c0_14] : memref<8x1xf32, #tpu.memory_space<vmem>>, vector<8x1xf32>
    %cst_15 = arith.constant dense<0.000000e+00> : vector<8xf32>
    %20 = vector.multi_reduction <add>, %9, %cst_15 [1] : vector<8x128xf32> to vector<8xf32>
    %21 = vector.shape_cast %20 : vector<8xf32> to vector<8x1xf32>
    %22 = arith.addf %19, %21 : vector<8x1xf32>
    %c0_16 = arith.constant 0 : index
    %c0_17 = arith.constant 0 : index
    %23 = vector.load %arg9[%c0_16, %c0_17] : memref<8x1xf32, #tpu.memory_space<vmem>>, vector<8x1xf32>
    tpu.vector_store %arg9[%c0_16, %c0_17], %22 {strides = array<i32>} : memref<8x1xf32, #tpu.memory_space<vmem>>, vector<8x1xf32>,
    %c0_i32_18 = arith.constant 0 : i32
    %24 = arith.cmpi eq, %arg0, %c0_i32_18 : i32
    %25 = arith.extui %24 : i1 to i32
    %c0_i32_19 = arith.constant 0 : i32
    %26 = arith.cmpi ne, %25, %c0_i32_19 : i32
    scf.if %26 {
      %c0_20 = arith.constant 0 : index
      %c0_21 = arith.constant 0 : index
      %27 = vector.load %arg9[%c0_20, %c0_21] : memref<8x1xf32, #tpu.memory_space<vmem>>, vector<8x1xf32>
      %cst_22 = arith.constant 1.000000e+00 : f32
      %28 = vector.broadcast %cst_22 : f32 to vector<8x1xf32>
      %29 = arith.maximumf %27, %28 : vector<8x1xf32>
      %c0_23 = arith.constant 0 : index
      %c0_24 = arith.constant 0 : index
      %30 = vector.load %arg7[%c0_23, %c0_24] : memref<8x128xf32, #tpu.memory_space<vmem>>, vector<8x128xf32>
      %31 = vector.broadcast %29 : vector<8x1xf32> to vector<8x128xf32>
      %32 = arith.divf %30, %31 : vector<8x128xf32>
      %c0_25 = arith.constant 0 : index
      %c0_26 = arith.constant 0 : index
      %33 = vector.load %arg8[%c0_25, %c0_26] : memref<8x128xf32, #tpu.memory_space<vmem>>, vector<8x128xf32>
      %34 = vector.broadcast %29 : vector<8x1xf32> to vector<8x128xf32>
      %35 = arith.mulf %34, %32 : vector<8x128xf32>
      %36 = arith.mulf %35, %32 : vector<8x128xf32>
      %37 = arith.subf %33, %36 : vector<8x128xf32>
      %cst_27 = arith.constant 0.000000e+00 : f32
      %38 = vector.broadcast %cst_27 : f32 to vector<8x128xf32>
      %39 = arith.maximumf %37, %38 : vector<8x128xf32>
      %cst_28 = arith.constant 1.000000e+00 : f32
      %40 = vector.broadcast %cst_28 : f32 to vector<8x1xf32>
      %41 = arith.subf %29, %40 : vector<8x1xf32>
      %cst_29 = arith.constant 1.000000e+00 : f32
      %42 = vector.broadcast %cst_29 : f32 to vector<8x1xf32>
      %43 = arith.maximumf %41, %42 : vector<8x1xf32>
      %cst_30 = arith.constant 9.99999997E-7 : f32
      %44 = vector.broadcast %cst_30 : f32 to vector<8x1xf32>
      %45 = arith.addf %43, %44 : vector<8x1xf32>
      %46 = vector.broadcast %45 : vector<8x1xf32> to vector<8x128xf32>
      %47 = arith.divf %39, %46 : vector<8x128xf32>
      %48 = math.sqrt %47 : vector<8x128xf32>
      %cst_31 = arith.constant 9.99999993E-9 : f32
      %49 = vector.broadcast %cst_31 : f32 to vector<8x128xf32>
      %50 = arith.addf %48, %49 : vector<8x128xf32>
      %cst_32 = arith.constant 1.000000e+00 : f32
      %51 = vector.broadcast %cst_32 : f32 to vector<8x128xf32>
      %52 = arith.divf %51, %50 : vector<8x128xf32>
      %c0_33 = arith.constant 0 : index
      %c0_34 = arith.constant 0 : index
      %53 = vector.load %arg3[%c0_33, %c0_34] : memref<1x128xf32, #tpu.memory_space<vmem>>, vector<1x128xf32>
      %54 = vector.broadcast %53 : vector<1x128xf32> to vector<8x128xf32>
      %55 = arith.mulf %54, %52 : vector<8x128xf32>
      %c0_35 = arith.constant 0 : index
      %c0_36 = arith.constant 0 : index
      %56 = vector.load %arg4[%c0_35, %c0_36] : memref<1x128xf32, #tpu.memory_space<vmem>>, vector<1x128xf32>
      %c0_37 = arith.constant 0 : index
      %c0_38 = arith.constant 0 : index
      %57 = vector.load %arg5[%c0_37, %c0_38] : memref<1x128xf32, #tpu.memory_space<vmem>>, vector<1x128xf32>
      %58 = vector.broadcast %57 : vector<1x128xf32> to vector<8x128xf32>
      %59 = arith.mulf %32, %58 : vector<8x128xf32>
      %60 = arith.mulf %59, %55 : vector<8x128xf32>
      %61 = vector.broadcast %56 : vector<1x128xf32> to vector<8x128xf32>
      %62 = arith.subf %61, %60 : vector<8x128xf32>
      %c0_39 = arith.constant 0 : index
      %c0_40 = arith.constant 0 : index
      %63 = vector.load %arg6[%c0_39, %c0_40] : memref<8x256xf32, #tpu.memory_space<vmem>>, vector<8x128xf32>
      tpu.vector_store %arg6[%c0_39, %c0_40], %55 {strides = array<i32>} : memref<8x256xf32, #tpu.memory_space<vmem>>, vector<8x128xf32>,
      %c0_41 = arith.constant 0 : index
      %c128 = arith.constant 128 : index
      %64 = vector.load %arg6[%c0_41, %c128] : memref<8x256xf32, #tpu.memory_space<vmem>>, vector<8x128xf32>
      tpu.vector_store %arg6[%c0_41, %c128], %62 {strides = array<i32>} : memref<8x256xf32, #tpu.memory_space<vmem>>, vector<8x128xf32>,
    } else {
    }
    return
  }
  func.func @transform_0(%arg0: i32) -> (i32, i32) {
    %c0_i32 = arith.constant 0 : i32
    %c0_i32_0 = arith.constant 0 : i32
    return %c0_i32, %arg0 : i32, i32
  }
  func.func @transform_1(%arg0: i32) -> (i32, i32) {
    %c0_i32 = arith.constant 0 : i32
    %c0_i32_0 = arith.constant 0 : i32
    return %arg0, %c0_i32 : i32, i32
  }
  func.func @transform_2(%arg0: i32) -> (i32, i32) {
    %c0_i32 = arith.constant 0 : i32
    %c0_i32_0 = arith.constant 0 : i32
    %c0_i32_1 = arith.constant 0 : i32
    return %c0_i32, %c0_i32_0 : i32, i32
  }
  func.func @transform_3(%arg0: i32) -> (i32, i32) {
    %c0_i32 = arith.constant 0 : i32
    %c0_i32_0 = arith.constant 0 : i32
    %c0_i32_1 = arith.constant 0 : i32
    return %c0_i32, %c0_i32_0 : i32, i32
  }
  func.func @transform_4(%arg0: i32) -> (i32, i32) {
    %c0_i32 = arith.constant 0 : i32
    %c0_i32_0 = arith.constant 0 : i32
    %c0_i32_1 = arith.constant 0 : i32
    return %c0_i32, %c0_i32_0 : i32, i32
  }
  func.func @transform_5(%arg0: i32) -> (i32, i32) {
    %c0_i32 = arith.constant 0 : i32
    %c0_i32_0 = arith.constant 0 : i32
    %c0_i32_1 = arith.constant 0 : i32
    return %c0_i32, %c0_i32_0 : i32, i32
  }
}

</mosaic_0001>

<llo_original>
// kernel: tpu_custom_call.1
$region0: #{tpu_custom_call.1}
  #allocation0 [shape = 'u32[]', space=smem, size = 0x4, offset = 0x4, fixed_abs, tag = 'smem constant byte address 0x4 - core index']
  #allocation1 [shape = 'u32[144,128]{1,0:T(1,128)}', space=vmem, size = 0x12000, scoped, tag = 'internal scratch']
  #allocation2 [shape = 'f32[8,128]{1,0:T(8,128)}', space=vmem, size = 0x1000, scoped, tag = 'scratch operand']
  #allocation3 [shape = 'f32[8,128]{1,0:T(8,128)}', space=vmem, size = 0x1000, scoped, tag = 'scratch operand']
  #allocation4 [shape = 'f32[8,1]{1,0:T(8,128)}', space=vmem, size = 0x1000, scoped, tag = 'scratch operand']
  %s0 = inlined_call_operand.hbm [shape: s32[1,128], index: 0, kind: input, shape index: {}]
  %s1 = inlined_call_operand.hbm [shape: f32[128,128], index: 1, kind: input, shape index: {}]
  %s2 = inlined_call_operand.vmem [shape: f32[1,128], index: 2, kind: input, shape index: {}]
  %s3 = inlined_call_operand.vmem [shape: f32[1,128], index: 3, kind: input, shape index: {}]
  %s4 = inlined_call_operand.vmem [shape: f32[1,128], index: 4, kind: input, shape index: {}]
  %s5 = inlined_call_operand.hbm [shape: f32[8,256], index: 5, kind: output, shape index: {}]
  %s6 = sld [smem:[#allocation0]]
  $region46: #{tpu_custom_call.1} parent=0
    _
  %s8 = ssub.s32 1, %s6
  %s9 = scalar_select 0, %s8, %s6
  $region1: #{tpu_custom_call.1} parent=0
    #allocation5 [shape = 'u8[512]{0}', space=vmem, size = 0x400, scoped, tag = 'input window, operand 0, single buffered']
    #allocation6 [shape = 's32[1]{0}', space=sflag, size = 0x4, scoped, tag = 'scoped memory for tpu_custom_call.1']
    #allocation7 [shape = 's32[1]{0}', space=sflag, size = 0x4, scoped, tag = 'scoped memory for tpu_custom_call.1']
    #allocation8 [shape = 'u8[65536]{0}', space=vmem, size = 0x10000, scoped, tag = 'input window, operand 1, single buffered']
    #allocation9 [shape = 's32[1]{0}', space=sflag, size = 0x4, scoped, tag = 'scoped memory for tpu_custom_call.1']
    #allocation10 [shape = 'u8[8192]{0}', space=vmem, size = 0x2000, scoped, tag = 'output window, operand 0, single buffered']
    %10 = vsyncpa [#allocation6], 0
    %11 = vsyncpa [#allocation9], 0
    %12 = vsyncpa [#allocation7], 0
    // Predicated region
    $region2: #{tpu_custom_call.1} parent=1 // pred_check
      _
    $region3: #{tpu_custom_call.1} parent=1 // pred_check_branch
      %14 = sbr.rel (0) target = $region5
    $region4: #{tpu_custom_call.1} parent=1 // pred_region
      %s16 = ssub.s32 16, 16
      %17 = vsyncadd [#allocation6], %s16
      %s19 = sshll.u32 [#allocation5], 4
      %s20 = int_to_ptr.vmem [resolvable:$true] %s19
      %22 = dma.hbm_to_vmem [thread:$0]  %s0, 16, %s20, [#allocation6]
    $region5: #{tpu_custom_call.1} parent=1 // pred_fallthru
      _
    // Predicated region
    $region6: #{tpu_custom_call.1} parent=1 // pred_check
      _
    $region7: #{tpu_custom_call.1} parent=1 // pred_check_branch
      %24 = sbr.rel (0) target = $region9
    $region8: #{tpu_custom_call.1} parent=1 // pred_region
      %s26 = ssub.s32 2048, 2048
      %27 = vsyncadd [#allocation9], %s26
      %s28 = sshll.u32 [#allocation8], 4
      %s29 = int_to_ptr.vmem [resolvable:$true] %s28
      %34 = dma.hbm_to_vmem [thread:$0]  %s1, 2048, %s29, [#allocation9], 128, 128, 8
    $region9: #{tpu_custom_call.1} parent=1 // pred_fallthru
      _
    // Predicated region
    $region10: #{tpu_custom_call.1} parent=1 // pred_check
      _
    $region11: #{tpu_custom_call.1} parent=1 // pred_check_branch
      %36 = sbr.rel (0) target = $region13
    $region12: #{tpu_custom_call.1} parent=1 // pred_region
      _
    $region13: #{tpu_custom_call.1} parent=1 // pred_fallthru
      _
    // Predicated region
    $region14: #{tpu_custom_call.1} parent=1 // pred_check
      _
    $region15: #{tpu_custom_call.1} parent=1 // pred_check_branch
      %38 = sbr.rel (0) target = $region17
    $region16: #{tpu_custom_call.1} parent=1 // pred_region
      _
    $region17: #{tpu_custom_call.1} parent=1 // pred_fallthru
      _
    // Predicated region
    $region18: #{tpu_custom_call.1} parent=1 // pred_check
      _
    $region19: #{tpu_custom_call.1} parent=1 // pred_check_branch
      %40 = sbr.rel (0) target = $region21
    $region20: #{tpu_custom_call.1} parent=1 // pred_region
      _
    $region21: #{tpu_custom_call.1} parent=1 // pred_fallthru
      _
    // Predicated region
    $region22: #{tpu_custom_call.1} parent=1 // pred_check
      _
    $region23: #{tpu_custom_call.1} parent=1 // pred_check_branch
      %42 = sbr.rel (0) target = $region25
    $region24: #{tpu_custom_call.1} parent=1 // pred_region
      %43 = dma.done [#allocation6], 16
    $region25: #{tpu_custom_call.1} parent=1 // pred_fallthru
      _
    // Predicated region
    $region26: #{tpu_custom_call.1} parent=1 // pred_check
      _
    $region27: #{tpu_custom_call.1} parent=1 // pred_check_branch
      %45 = sbr.rel (0) target = $region29
    $region28: #{tpu_custom_call.1} parent=1 // pred_region
      %46 = dma.done [#allocation9], 2048
    $region29: #{tpu_custom_call.1} parent=1 // pred_fallthru
      _
    %p47 = scmp.eq.s32.totalorder 0, 0
    // Predicated region
    $region30: #{tpu_custom_call.1} parent=1 // pred_check
      %p48 = pneg %p47
    $region31: #{tpu_custom_call.1} parent=1 // pred_check_branch
      %50 = sbr.rel (%p48) target = $region33
    $region32: #{tpu_custom_call.1} parent=1 // pred_region
      %51 = vst [vmem:[#allocation2] sm:$0xff] 0.0
      %52 = vst [vmem:[#allocation3] sm:$0xff] 0.0
      %vm53 = vcmask 7168
      %54 = vst.msk [vmem:[#allocation4] sm:$0xff] %vm53, 0.0
    $region33: #{tpu_custom_call.1} parent=1 // pred_fallthru
      _
    %v55 = vld [vmem:[#allocation8] sm:$0xff]
    %v56 = vld [vmem:[#allocation8 + $0x8] sm:$0xff]
    %v57 = vld [vmem:[#allocation8 + $0x10] sm:$0xff]
    %v58 = vld [vmem:[#allocation8 + $0x18] sm:$0xff]
    %v59 = vld [vmem:[#allocation8 + $0x20] sm:$0xff]
    %v60 = vld [vmem:[#allocation8 + $0x28] sm:$0xff]
    %v61 = vld [vmem:[#allocation8 + $0x30] sm:$0xff]
    %v62 = vld [vmem:[#allocation8 + $0x38] sm:$0xff]
    %v63 = vld [vmem:[#allocation8 + $0x40] sm:$0xff]
    %v64 = vld [vmem:[#allocation8 + $0x48] sm:$0xff]
    %v65 = vld [vmem:[#allocation8 + $0x50] sm:$0xff]
    %v66 = vld [vmem:[#allocation8 + $0x58] sm:$0xff]
    %v67 = vld [vmem:[#allocation8 + $0x60] sm:$0xff]
    %v68 = vld [vmem:[#allocation8 + $0x68] sm:$0xff]
    %v69 = vld [vmem:[#allocation8 + $0x70] sm:$0xff]
    %v70 = vld [vmem:[#allocation8 + $0x78] sm:$0xff]
    %v71 = vlaneseq
    %v72 = vshrl.u32 %v71, 7
    %v73 = vld [vmem:[#allocation5] sm:$0x1]
    %v74 = vlaneseq
    %v75 = vshrl.u32 %v74, 7
    %v76 = vsub.s32 0, %v75
    %v77 = vrot.slane %v73, %v76
    %vm78 = vcmp.eq.s32.totalorder %v72, %v77
    %v79 = vsel %vm78, 1, 0
    %v80 = vcvt.s32.f32 %v79
    %v81 = vld [vmem:[#allocation2] sm:$0xff]
    %82 = vmatprep.subr.mxu0 0.0
    %83 = vmatpush1.msra.mxu0 %v55
    %84 = vmatprep.subr.mxu0 0.0
    %85 = vmatpush1.msra.mxu0 %v56
    %86 = vmatprep.subr.mxu0 0.0
    %87 = vmatpush1.msra.mxu0 %v57
    %88 = vmatprep.subr.mxu0 0.0
    %89 = vmatpush1.msra.mxu0 %v58
    %90 = vmatprep.subr.mxu0 0.0
    %91 = vmatpush1.msra.mxu0 %v59
    %92 = vmatprep.subr.mxu0 0.0
    %93 = vmatpush1.msra.mxu0 %v60
    %94 = vmatprep.subr.mxu0 0.0
    %95 = vmatpush1.msra.mxu0 %v61
    %96 = vmatprep.subr.mxu0 0.0
    %97 = vmatpush1.msra.mxu0 %v62
    %98 = vmatprep.subr.mxu0 0.0
    %99 = vmatpush1.msra.mxu0 %v63
    %100 = vmatprep.subr.mxu0 0.0
    %101 = vmatpush1.msra.mxu0 %v64
    %102 = vmatprep.subr.mxu0 0.0
    %103 = vmatpush1.msra.mxu0 %v65
    %104 = vmatprep.subr.mxu0 0.0
    %105 = vmatpush1.msra.mxu0 %v66
    %106 = vmatprep.subr.mxu0 0.0
    %107 = vmatpush1.msra.mxu0 %v67
    %108 = vmatprep.subr.mxu0 0.0
    %109 = vmatpush1.msra.mxu0 %v68
    %110 = vmatprep.subr.mxu0 0.0
    %111 = vmatpush1.msra.mxu0 %v69
    %112 = vmatprep.subr.mxu0 0.0
    %113 = vmatpush1.msra.mxu0 %v70
    %114 = vmatprep.subr.mxu0 0.0
    %115 = vmatpush1.msra.mxu0 0.0
    %116 = vmatprep.subr.mxu0 0.0
    %117 = vmatpush1.msra.mxu0 0.0
    %118 = vmatprep.subr.mxu0 0.0
    %119 = vmatpush1.msra.mxu0 0.0
    %120 = vmatprep.subr.mxu0 0.0
    %121 = vmatpush1.msra.mxu0 0.0
    %122 = vmatprep.subr.mxu0 0.0
    %123 = vmatpush1.msra.mxu0 0.0
    %124 = vmatprep.subr.mxu0 0.0
    %125 = vmatpush1.msra.mxu0 0.0
    %126 = vmatprep.subr.mxu0 0.0
    %127 = vmatpush1.msra.mxu0 0.0
    %128 = vmatprep.subr.mxu0 0.0
    %129 = vmatpush1.msra.mxu0 0.0
    %130 = vmatprep.subr.mxu0 0.0
    %131 = vmatpush1.msra.mxu0 0.0
    %132 = vmatprep.subr.mxu0 0.0
    %133 = vmatpush1.msra.mxu0 0.0
    %134 = vmatprep.subr.mxu0 0.0
    %135 = vmatpush1.msra.mxu0 0.0
    %136 = vmatprep.subr.mxu0 0.0
    %137 = vmatpush1.msra.mxu0 0.0
    %138 = vmatprep.subr.mxu0 0.0
    %139 = vmatpush1.msra.mxu0 0.0
    %140 = vmatprep.subr.mxu0 0.0
    %141 = vmatpush1.msra.mxu0 0.0
    %142 = vmatprep.subr.mxu0 0.0
    %143 = vmatpush1.msra.mxu0 0.0
    %144 = vmatprep.subr.mxu0 0.0
    %145 = vmatpush1.msra.mxu0 0.0
    %146 = vmatprep.mubr.f32.mxu0 0.0
    %147 = vmatmul.mubr.f32.gmra.mrb[0].mxu0 %v80
    %v148 = vpop.f32.mrb[0].mxu0
    %v149 = vadd.f32 0.0, %v148
    %v150 = vpop.f32.mrb[0].mxu0
    %151 = vdwg.mxu0
    %v152 = vadd.f32 %v81, %v149
    %153 = vst [vmem:[#allocation2] sm:$0xff] %v152
    %v154 = vld [vmem:[#allocation3] sm:$0xff]
    %v155 = vmul.f32 %v55, %v55
    %v156 = vmul.f32 %v56, %v56
    %v157 = vmul.f32 %v57, %v57
    %v158 = vmul.f32 %v58, %v58
    %v159 = vmul.f32 %v59, %v59
    %v160 = vmul.f32 %v60, %v60
    %v161 = vmul.f32 %v61, %v61
    %v162 = vmul.f32 %v62, %v62
    %v163 = vmul.f32 %v63, %v63
    %v164 = vmul.f32 %v64, %v64
    %v165 = vmul.f32 %v65, %v65
    %v166 = vmul.f32 %v66, %v66
    %v167 = vmul.f32 %v67, %v67
    %v168 = vmul.f32 %v68, %v68
    %v169 = vmul.f32 %v69, %v69
    %v170 = vmul.f32 %v70, %v70
    %171 = vmatprep.subr.mxu0 0.0
    %172 = vmatpush1.msra.mxu0 %v155
    %173 = vmatprep.subr.mxu0 0.0
    %174 = vmatpush1.msra.mxu0 %v156
    %175 = vmatprep.subr.mxu0 0.0
    %176 = vmatpush1.msra.mxu0 %v157
    %177 = vmatprep.subr.mxu0 0.0
    %178 = vmatpush1.msra.mxu0 %v158
    %179 = vmatprep.subr.mxu0 0.0
    %180 = vmatpush1.msra.mxu0 %v159
    %181 = vmatprep.subr.mxu0 0.0
    %182 = vmatpush1.msra.mxu0 %v160
    %183 = vmatprep.subr.mxu0 0.0
    %184 = vmatpush1.msra.mxu0 %v161
    %185 = vmatprep.subr.mxu0 0.0
    %186 = vmatpush1.msra.mxu0 %v162
    %187 = vmatprep.subr.mxu0 0.0
    %188 = vmatpush1.msra.mxu0 %v163
    %189 = vmatprep.subr.mxu0 0.0
    %190 = vmatpush1.msra.mxu0 %v164
    %191 = vmatprep.subr.mxu0 0.0
    %192 = vmatpush1.msra.mxu0 %v165
    %193 = vmatprep.subr.mxu0 0.0
    %194 = vmatpush1.msra.mxu0 %v166
    %195 = vmatprep.subr.mxu0 0.0
    %196 = vmatpush1.msra.mxu0 %v167
    %197 = vmatprep.subr.mxu0 0.0
    %198 = vmatpush1.msra.mxu0 %v168
    %199 = vmatprep.subr.mxu0 0.0
    %200 = vmatpush1.msra.mxu0 %v169
    %201 = vmatprep.subr.mxu0 0.0
    %202 = vmatpush1.msra.mxu0 %v170
    %203 = vmatprep.subr.mxu0 0.0
    %204 = vmatpush1.msra.mxu0 0.0
    %205 = vmatprep.subr.mxu0 0.0
    %206 = vmatpush1.msra.mxu0 0.0
    %207 = vmatprep.subr.mxu0 0.0
    %208 = vmatpush1.msra.mxu0 0.0
    %209 = vmatprep.subr.mxu0 0.0
    %210 = vmatpush1.msra.mxu0 0.0
    %211 = vmatprep.subr.mxu0 0.0
    %212 = vmatpush1.msra.mxu0 0.0
    %213 = vmatprep.subr.mxu0 0.0
    %214 = vmatpush1.msra.mxu0 0.0
    %215 = vmatprep.subr.mxu0 0.0
    %216 = vmatpush1.msra.mxu0 0.0
    %217 = vmatprep.subr.mxu0 0.0
    %218 = vmatpush1.msra.mxu0 0.0
    %219 = vmatprep.subr.mxu0 0.0
    %220 = vmatpush1.msra.mxu0 0.0
    %221 = vmatprep.subr.mxu0 0.0
    %222 = vmatpush1.msra.mxu0 0.0
    %223 = vmatprep.subr.mxu0 0.0
    %224 = vmatpush1.msra.mxu0 0.0
    %225 = vmatprep.subr.mxu0 0.0
    %226 = vmatpush1.msra.mxu0 0.0
    %227 = vmatprep.subr.mxu0 0.0
    %228 = vmatpush1.msra.mxu0 0.0
    %229 = vmatprep.subr.mxu0 0.0
    %230 = vmatpush1.msra.mxu0 0.0
    %231 = vmatprep.subr.mxu0 0.0
    %232 = vmatpush1.msra.mxu0 0.0
    %233 = vmatprep.subr.mxu0 0.0
    %234 = vmatpush1.msra.mxu0 0.0
    %235 = vmatprep.mubr.f32.mxu0 0.0
    %236 = vmatmul.mubr.f32.gmra.mrb[0].mxu0 %v80
    %v237 = vpop.f32.mrb[0].mxu0
    %v238 = vadd.f32 0.0, %v237
    %v239 = vpop.f32.mrb[0].mxu0
    %240 = vdwg.mxu0
    %v241 = vadd.f32 %v154, %v238
    %242 = vst [vmem:[#allocation3] sm:$0xff] %v241
    %v243 = vld [vmem:[#allocation4] sm:$0xff]
    %244 = vadd.xlane.f32.xlu0 %v80
    %v245 = vpop.xlane.xlu0 %244
    %v246 = vadd.f32 %v243, %v245
    %vm247 = vcmask 7168
    %248 = vst.msk [vmem:[#allocation4] sm:$0xff] %vm247, %v246
    // Predicated region
    $region34: #{tpu_custom_call.1} parent=1 // pred_check
      %p249 = pneg %p47
    $region35: #{tpu_custom_call.1} parent=1 // pred_check_branch
      %251 = sbr.rel (%p249) target = $region37
    $region36: #{tpu_custom_call.1} parent=1 // pred_region
      %v252 = vld [vmem:[#allocation4] sm:$0xff]
      %v253 = vmax.f32 %v252, 1.0
      %v254 = vld [vmem:[#allocation2] sm:$0xff]
      %256 = vset.pattern.permute.xlu0 0
      %257 = vperm.xlu0 %256, %v253
      %v258 = vpop.permute.xlu0 %257
      %v260 = vrcp.pop %v258
      %v261 = vmul.f32 %v254, %v260
      %v262 = vld [vmem:[#allocation3] sm:$0xff]
      %v263 = vmul.f32 %v258, %v261
      %v264 = vmul.f32 %v263, %v261
      %v265 = vsub.f32 %v262, %v264
      %v266 = vmax.f32 %v265, 0.0
      %v267 = vsub.f32 %v253, 1.0
      %v268 = vmax.f32 %v267, 1.0
      %v269 = vadd.f32 %v268, 1e-06
      %271 = vset.pattern.permute.xlu0 0
      %272 = vperm.xlu0 %271, %v269
      %v273 = vpop.permute.xlu0 %272
      %v275 = vrcp.pop %v273
      %v276 = vmul.f32 %v266, %v275
      %v277 = vrsqrt.pop %v276
      %v278 = vmul.f32 %v276, %v277
      %vm279 = vcmp.eq.f32.partialorder %v276, inf
      %v280 = vsel %vm279, %v276, %v278
      %vm281 = vcmp.eq.f32.partialorder %v276, 0.0
      %v282 = vand.u32 %v276, 2147483648
      %v283 = vsel %vm281, %v282, %v280
      %v284 = vadd.f32 %v283, 1e-08
      %v285 = vrcp.pop %v284
      %v286 = vmul.f32 1.0, %v285
      %v287 = vld [vmem:[%s2] sm:$0x1]
      %v289 = vlaneseq
      %v290 = vshrl.u32 %v289, 7
      %v291 = vsub.s32 0, %v290
      %v292 = vrot.slane %v287, %v291
      %v294 = vmul.f32 %v292, %v286
      %v295 = vld [vmem:[%s3] sm:$0x1]
      %v296 = vld [vmem:[%s4] sm:$0x1]
      %v298 = vlaneseq
      %v299 = vshrl.u32 %v298, 7
      %v300 = vsub.s32 0, %v299
      %v301 = vrot.slane %v296, %v300
      %v303 = vmul.f32 %v261, %v301
      %v304 = vmul.f32 %v303, %v294
      %v306 = vlaneseq
      %v307 = vshrl.u32 %v306, 7
      %v308 = vsub.s32 0, %v307
      %v309 = vrot.slane %v295, %v308
      %v311 = vsub.f32 %v309, %v304
      %312 = vst [vmem:[#allocation10] sm:$0xff] %v294
      %313 = vst [vmem:[#allocation10 + $0x8] sm:$0xff] %v311
    $region37: #{tpu_custom_call.1} parent=1 // pred_fallthru
      _
    // Predicated region
    $region38: #{tpu_custom_call.1} parent=1 // pred_check
      _
    $region39: #{tpu_custom_call.1} parent=1 // pred_check_branch
      %315 = sbr.rel (0) target = $region41
    $region40: #{tpu_custom_call.1} parent=1 // pred_region
      %s317 = ssub.s32 256, 256
      %318 = vsyncadd [#allocation7], %s317
      %s320 = sshll.u32 [#allocation10], 4
      %s321 = int_to_ptr.vmem [resolvable:$true] %s320
      %323 = dma.vmem_to_hbm [thread:$0]  %s321, 256, %s5, [#allocation7]
    $region41: #{tpu_custom_call.1} parent=1 // pred_fallthru
      _
    // Predicated region
    $region42: #{tpu_custom_call.1} parent=1 // pred_check
      _
    $region43: #{tpu_custom_call.1} parent=1 // pred_check_branch
      %325 = sbr.rel (0) target = $region45
    $region44: #{tpu_custom_call.1} parent=1 // pred_region
      %326 = dma.done [#allocation7], 256
    $region45: #{tpu_custom_call.1} parent=1 // pred_fallthru
      _
    %327 = vsyncpa [#allocation6], 1
    %328 = vsyncpa [#allocation9], 1
    %329 = vsyncpa [#allocation7], 1

</llo_original>
